<compile_context>
chip_gen: v7x
topology: tpu7x:2x2x1
jax: 0.10.0
libtpu: 0.0.40
codegen_flags: <defaults>
</compile_context>

<pallas_src>
import functools

import jax
import jax.numpy as jnp
from jax import lax
from jax.experimental import pallas as pl
from jax.experimental.pallas import tpu as pltpu

_LANES = 128


# ----------------------------------------------------------------------------
# In-kernel helpers
# ----------------------------------------------------------------------------

def _cam_block(x, gamma, temperaturesa, mxu_dtype):
    """Channel-attention (CAM) applied to one (C, HW) feature map."""
    xm = x.astype(mxu_dtype)
    # energy[i, j] = <x_i, x_j>  (channel Gram matrix)
    energy = lax.dot_general(xm, xm, (((1,), (1,)), ((), ())),
                             preferred_element_type=jnp.float32)      # (C, C)
    energy_new = jnp.max(energy, axis=-1, keepdims=True) - energy
    logits = energy_new / temperaturesa
    # numerically stable softmax over the last dim (== torch.Softmax(dim=-1))
    logits = logits - jnp.max(logits, axis=-1, keepdims=True)
    p = jnp.exp(logits)
    attn = p * pl.reciprocal(jnp.sum(p, axis=-1, keepdims=True), approx=True)
    out = jnp.dot(attn.astype(mxu_dtype), xm,
                  preferred_element_type=jnp.float32)                 # (C, HW)
    return gamma * out + x


def _gram_from_slab(slab_ref):
    """(B,B) Gram of the flattened slab: L[i,j] = sum_{c,hw} S[i,c,hw]S[j,c,hw].

    Static unroll over channels avoids any in-kernel reshape/relayout of the
    slab.  Channel counts are small here; for large C switch to a
    lax.fori_loop over pl.ds channel chunks.
    """
    B, C, _ = slab_ref.shape
    acc = jnp.zeros((B, B), jnp.float32)
    for c in range(C):
        xc = slab_ref[:, c, :]                                        # (B, HW)
        acc = acc + lax.dot_general(xc, xc, (((1,), (1,)), ((), ())),
                                    preferred_element_type=jnp.float32)
    return acc


def _centering(K):
    # H K H  ==  K - rowmean - colmean + grandmean   (H = I - 11^T/n)
    row_mean = jnp.mean(K, axis=1, keepdims=True)
    col_mean = jnp.mean(K, axis=0, keepdims=True)
    return K - row_mean - col_mean + jnp.mean(K)


# ----------------------------------------------------------------------------
# Fused kernels
# ----------------------------------------------------------------------------

def _cam_mse_fused_kernel(gamma_ref, w_ref, xs_ref, xt_ref, o_ref, *,
                          temperaturesa, inv_n, mxu_dtype):
    b = pl.program_id(0)

    @pl.when(b == 0)
    def _init():
        o_ref[...] = jnp.zeros_like(o_ref)

    gamma = gamma_ref[0]
    xs = xs_ref[0]                                    # (CS, HW)
    xt = xt_ref[0]                                    # (CT, HW)

    # 1x1 conv (no bias): (CT, CS) @ (CS, HW)
    fs = jnp.dot(w_ref[...].astype(mxu_dtype), xs.astype(mxu_dtype),
                 preferred_element_type=jnp.float32)  # (CT, HW)

    cam_s = _cam_block(fs, gamma, temperaturesa, mxu_dtype)
    cam_t = _cam_block(xt, gamma, temperaturesa, mxu_dtype)

    d = cam_s - cam_t
    # accumulate the squared-difference sum in the resident output block
    o_ref[...] += jnp.sum(d * d)

    @pl.when(b == pl.num_programs(0) - 1)
    def _final():
        o_ref[...] = o_ref[...] * inv_n


def _cam_cka_fused_kernel(gamma_ref, xs_ref, xt_ref, o_ref,
                          cams_ref, camt_ref, *,
                          temperaturesa, mxu_dtype, eps):
    b = pl.program_id(0)
    gamma = gamma_ref[0]

    @pl.when(b == 0)
    def _init():
        o_ref[...] = jnp.zeros_like(o_ref)

    # Per-batch CAM outputs stay in VMEM scratch -- never written to HBM.
    cams_ref[b] = _cam_block(xs_ref[0], gamma, temperaturesa, mxu_dtype)
    camt_ref[b] = _cam_block(xt_ref[0], gamma, temperaturesa, mxu_dtype)

    @pl.when(b == pl.num_programs(0) - 1)
    def _final():
        clx = _centering(_gram_from_slab(cams_ref))
        cly = _centering(_gram_from_slab(camt_ref))
        hsic = jnp.sum(clx * cly)
        var1 = jnp.sqrt(jnp.sum(clx * clx))
        var2 = jnp.sqrt(jnp.sum(cly * cly))
        # NOTE: eps is added AFTER the division, exactly as in the PyTorch
        # reference (so degenerate var1*var2 == 0 behaves identically).
        loss = -jnp.log(jnp.abs(hsic / (var1 * var2)) + eps)
        o_ref[...] = jnp.full(o_ref.shape, loss, jnp.float32)


# ----------------------------------------------------------------------------
# Wrappers
# ----------------------------------------------------------------------------

def _clamp_vmem(need_bytes):
    # derive the scoped-VMEM limit from actual block sizes, with headroom;
    # keep within what every generation (incl. v7x 64 MiB) can honor.
    return int(min(max(2 * need_bytes, 32 << 20), 64 << 20))


def cam_mse_loss(feat_S, feat_T, w, gamma, temperaturesa,
                 mxu_dtype=jnp.float32):
    """Fused conv1x1 -> CAM -> CAM -> MSE(mean). Returns a scalar."""
    B, CS, H, W = feat_S.shape
    _, CT, _, _ = feat_T.shape
    HW = H * W
    xs = feat_S.reshape(B, CS, HW).astype(jnp.float32)
    xt = feat_T.reshape(B, CT, HW).astype(jnp.float32)
    inv_n = 1.0 / float(B * CT * HW)

    need = 4 * (CT * CS                        # resident weight
                + 2 * 2 * (CS + CT) * HW       # double-buffered input blocks
                + 8 * CT * HW + 2 * CS * HW    # conv / CAM temporaries
                + 4 * CT * CT + 2 * CS * CS    # energy / attention
                + 4 * _LANES)

    kernel = functools.partial(_cam_mse_fused_kernel,
                               temperaturesa=float(temperaturesa),
                               inv_n=inv_n, mxu_dtype=mxu_dtype)
    out = pl.pallas_call(
        kernel,
        out_shape=jax.ShapeDtypeStruct((1, _LANES), jnp.float32),
        grid=(B,),
        in_specs=[
            pl.BlockSpec(memory_space=pltpu.MemorySpace.SMEM),     # gamma
            pl.BlockSpec((CT, CS), lambda b: (0, 0)),              # conv weight
            pl.BlockSpec((1, CS, HW), lambda b: (b, 0, 0)),        # feat_S
            pl.BlockSpec((1, CT, HW), lambda b: (b, 0, 0)),        # feat_T
        ],
        out_specs=pl.BlockSpec((1, _LANES), lambda b: (0, 0)),
        compiler_params=pltpu.CompilerParams(
            dimension_semantics=("arbitrary",),    # scalar accumulation axis
            vmem_limit_bytes=_clamp_vmem(need)),
    )(gamma, w, xs, xt)
    return out[0, 0]


def cam_cka_loss(feat_S, feat_T, gamma, temperaturesa,
                 mxu_dtype=jnp.float32):
    """Fused CAM -> CAM -> linear-CKA loss. Returns a scalar."""
    B, CS, H, W = feat_S.shape
    _, CT, _, _ = feat_T.shape
    HW = H * W
    xs = feat_S.reshape(B, CS, HW).astype(jnp.float32)
    xt = feat_T.reshape(B, CT, HW).astype(jnp.float32)

    need = 4 * (B * (CS + CT) * HW             # CAM VMEM slabs
                + 2 * 2 * (CS + CT) * HW       # double-buffered input blocks
                + 6 * (CS + CT) * HW           # CAM temporaries
                + 3 * (CS * CS + CT * CT)      # energy / attention
                + 8 * B * B + 4 * _LANES)

    kernel = functools.partial(_cam_cka_fused_kernel,
                               temperaturesa=float(temperaturesa),
                               mxu_dtype=mxu_dtype, eps=1e-08)
    out = pl.pallas_call(
        kernel,
        out_shape=jax.ShapeDtypeStruct((1, _LANES), jnp.float32),
        grid=(B,),
        in_specs=[
            pl.BlockSpec(memory_space=pltpu.MemorySpace.SMEM),     # gamma
            pl.BlockSpec((1, CS, HW), lambda b: (b, 0, 0)),        # feat_S
            pl.BlockSpec((1, CT, HW), lambda b: (b, 0, 0)),        # feat_T
        ],
        out_specs=pl.BlockSpec((1, _LANES), lambda b: (0, 0)),
        scratch_shapes=[
            pltpu.VMEM((B, CS, HW), jnp.float32),                  # CAM_S slab
            pltpu.VMEM((B, CT, HW), jnp.float32),                  # CAM_T slab
        ],
        compiler_params=pltpu.CompilerParams(
            dimension_semantics=("arbitrary",),    # slab filled across steps
            vmem_limit_bytes=_clamp_vmem(need)),
    )(gamma, xs, xt)
    return out[0, 0]


# ----------------------------------------------------------------------------
# Module
# ----------------------------------------------------------------------------

class CriterionSAPallas:
    def __init__(self, temperature=1.0, temperaturesa=1.0,
                 use_bf16_matmul=False):
        self.temperature = temperature           # kept for parity (unused, as in ref)
        self.temperaturesa = temperaturesa
        # nn.Parameter(torch.zeros(1)) x2
        self.gammacam = jnp.zeros((1,), jnp.float32)
        self.gammapam = jnp.zeros((1,), jnp.float32)
        # Flip to True on v6e/v7x for ~2x MXU throughput + half the VMEM/HBM
        # traffic on matmul operands (f32 accumulation kept).
        self.mxu_dtype = jnp.bfloat16 if use_bf16_matmul else jnp.float32

    def _make_conv_weight(self, CS, CT):
        # Deterministic stand-in for nn.Conv2d(CS, CT, 1, bias=False) default
        # init: uniform(-1/sqrt(fan_in), 1/sqrt(fan_in)), fan_in = CS.
        bound = 1.0 / jnp.sqrt(jnp.float32(CS))
        key = jax.random.PRNGKey(42)
        return jax.random.uniform(key, (CT, CS), jnp.float32, -bound, bound)

    def forward(self, feat_S, feat_T, feature_transform="CAM_MSE"):
        B, CS, H, W = feat_S.shape
        _, CT, _, _ = feat_T.shape

        if feature_transform == "CAM_MSE":
            w = self._make_conv_weight(CS, CT)
            return cam_mse_loss(feat_S, feat_T, w, self.gammacam,
                                self.temperaturesa, mxu_dtype=self.mxu_dtype)

        elif feature_transform == "CAM_CKA":
            return cam_cka_loss(feat_S, feat_T, self.gammacam,
                                self.temperaturesa, mxu_dtype=self.mxu_dtype)

        else:
            # TODO(synk): PAM_CKA / gridPAM_* / separately_* branches rely on
            # Conv2d layers freshly re-instantiated with random init on every
            # forward call in the reference; not reproduced here.
            raise NotImplementedError(feature_transform)


# ----------------------------------------------------------------------------
# Demo
# ----------------------------------------------------------------------------

if __name__ == "__main__":
    key = jax.random.PRNGKey(0)
    ks, kt = jax.random.split(key)
    B, CS, CT, H, W = 2, 8, 16, 16, 16
    feat_S = jax.random.normal(ks, (B, CS, H, W), jnp.float32)
    feat_T = jax.random.normal(kt, (B, CT, H, W), jnp.float32)

    crit = CriterionSAPallas(temperature=1.0, temperaturesa=1.0)

    loss_cam_mse = crit.forward(feat_S, feat_T, "CAM_MSE")
    loss_cam_cka = crit.forward(feat_S, feat_T, "CAM_CKA")

    jax.block_until_ready(loss_cam_mse)
    jax.block_until_ready(loss_cam_cka)

    print("KERNEL_OK")
</pallas_src>

<mosaic_0001>
module attributes {stable_mosaic.version = 11 : i64} {
  func.func @_cam_mse_fused_kernel(%arg0: i32, %arg1: memref<1xf32, #tpu.memory_space<smem>>, %arg2: memref<16x8xf32, #tpu.memory_space<vmem>>, %arg3: memref<1x8x256xf32, #tpu.memory_space<vmem>>, %arg4: memref<1x16x256xf32, #tpu.memory_space<vmem>>, %arg5: memref<1x128xf32, #tpu.memory_space<vmem>>) attributes {dimension_semantics = [#tpu.dimension_semantics<arbitrary>], iteration_bounds = array<i64: 2>, scalar_prefetch = 0 : i64, scratch_operands = 0 : i64, tpu.core_type = #tpu.core_type<tc>, window_params = [{transform_indices = @transform_0, window_bounds = array<i64: 1>}, {pipeline_mode = #tpu.pipeline_mode<synchronous>, transform_indices = @transform_1, window_bounds = array<i64: 16, 8>}, {transform_indices = @transform_2, window_bounds = array<i64: 1, 8, 256>}, {transform_indices = @transform_3, window_bounds = array<i64: 1, 16, 256>}, {pipeline_mode = #tpu.pipeline_mode<synchronous>, transform_indices = @transform_4, window_bounds = array<i64: 1, 128>}]} {
    %c0_i32 = arith.constant 0 : i32
    %0 = arith.cmpi eq, %arg0, %c0_i32 : i32
    %1 = arith.extui %0 : i1 to i32
    %c0_i32_0 = arith.constant 0 : i32
    %2 = arith.cmpi ne, %1, %c0_i32_0 : i32
    scf.if %2 {
      %cst_27 = arith.constant 0.000000e+00 : f32
      %65 = vector.broadcast %cst_27 : f32 to vector<1x128xf32>
      %c0_28 = arith.constant 0 : index
      %c0_29 = arith.constant 0 : index
      %66 = vector.load %arg5[%c0_28, %c0_29] : memref<1x128xf32, #tpu.memory_space<vmem>>, vector<1x128xf32>
      tpu.vector_store %arg5[%c0_28, %c0_29], %65 {strides = array<i32>} : memref<1x128xf32, #tpu.memory_space<vmem>>, vector<1x128xf32>,
    } else {
    }
    %c0 = arith.constant 0 : index
    %3 = memref.load %arg1[%c0] : memref<1xf32, #tpu.memory_space<smem>>
    %c0_1 = arith.constant 0 : index
    %c0_2 = arith.constant 0 : index
    %c0_3 = arith.constant 0 : index
    %4 = vector.load %arg3[%c0_1, %c0_2, %c0_3] : memref<1x8x256xf32, #tpu.memory_space<vmem>>, vector<1x8x256xf32>
    %5 = vector.shape_cast %4 : vector<1x8x256xf32> to vector<8x256xf32>
    %c0_4 = arith.constant 0 : index
    %c0_5 = arith.constant 0 : index
    %c0_6 = arith.constant 0 : index
    %6 = vector.load %arg4[%c0_4, %c0_5, %c0_6] : memref<1x16x256xf32, #tpu.memory_space<vmem>>, vector<1x16x256xf32>
    %7 = vector.shape_cast %6 : vector<1x16x256xf32> to vector<16x256xf32>
    %c0_7 = arith.constant 0 : index
    %c0_8 = arith.constant 0 : index
    %8 = vector.load %arg2[%c0_7, %c0_8] : memref<16x8xf32, #tpu.memory_space<vmem>>, vector<16x8xf32>
    %cst = arith.constant dense<0.000000e+00> : vector<16x256xf32>
    %9 = tpu.matmul %8, %5, %cst {dimension_numbers = #tpu.dot_dimension_numbers<[1], [0], [0], [1], [0, 0, 1, 1], [], []>} : vector<16x8xf32>, vector<8x256xf32>, vector<16x256xf32> -> vector<16x256xf32>
    %cst_9 = arith.constant dense<0.000000e+00> : vector<16x16xf32>
    %10 = tpu.matmul %9, %9, %cst_9 {dimension_numbers = #tpu.dot_dimension_numbers<[1], [1], [0], [0], [0, 0, 1, 0], [], []>} : vector<16x256xf32>, vector<16x256xf32>, vector<16x16xf32> -> vector<16x16xf32>
    %cst_10 = arith.constant dense<0xFF800000> : vector<16xf32>
    %11 = vector.multi_reduction <maximumf>, %10, %cst_10 [1] : vector<16x16xf32> to vector<16xf32>
    %12 = vector.shape_cast %11 : vector<16xf32> to vector<16x1xf32>
    %13 = vector.broadcast %12 : vector<16x1xf32> to vector<16x16xf32>
    %14 = arith.subf %13, %10 : vector<16x16xf32>
    %cst_11 = arith.constant 1.000000e+00 : f32
    %15 = vector.broadcast %cst_11 : f32 to vector<16x16xf32>
    %16 = arith.divf %14, %15 : vector<16x16xf32>
    %cst_12 = arith.constant dense<0xFF800000> : vector<16xf32>
    %17 = vector.multi_reduction <maximumf>, %16, %cst_12 [1] : vector<16x16xf32> to vector<16xf32>
    %18 = vector.shape_cast %17 : vector<16xf32> to vector<16x1xf32>
    %19 = vector.broadcast %18 : vector<16x1xf32> to vector<16x16xf32>
    %20 = arith.subf %16, %19 : vector<16x16xf32>
    %21 = math.exp %20 : vector<16x16xf32>
    %cst_13 = arith.constant dense<0.000000e+00> : vector<16xf32>
    %22 = vector.multi_reduction <add>, %21, %cst_13 [1] : vector<16x16xf32> to vector<16xf32>
    %23 = vector.shape_cast %22 : vector<16xf32> to vector<16x1xf32>
    %24 = tpu.reciprocal %23 {approx = true} : vector<16x1xf32> -> vector<16x1xf32>
    %25 = vector.broadcast %24 : vector<16x1xf32> to vector<16x16xf32>
    %26 = arith.mulf %21, %25 : vector<16x16xf32>
    %cst_14 = arith.constant dense<0.000000e+00> : vector<16x256xf32>
    %27 = tpu.matmul %26, %9, %cst_14 {dimension_numbers = #tpu.dot_dimension_numbers<[1], [0], [0], [1], [0, 0, 1, 1], [], []>} : vector<16x16xf32>, vector<16x256xf32>, vector<16x256xf32> -> vector<16x256xf32>
    %28 = vector.broadcast %3 : f32 to vector<16x256xf32>
    %29 = arith.mulf %28, %27 : vector<16x256xf32>
    %30 = arith.addf %29, %9 : vector<16x256xf32>
    %cst_15 = arith.constant dense<0.000000e+00> : vector<16x16xf32>
    %31 = tpu.matmul %7, %7, %cst_15 {dimension_numbers = #tpu.dot_dimension_numbers<[1], [1], [0], [0], [0, 0, 1, 0], [], []>} : vector<16x256xf32>, vector<16x256xf32>, vector<16x16xf32> -> vector<16x16xf32>
    %cst_16 = arith.constant dense<0xFF800000> : vector<16xf32>
    %32 = vector.multi_reduction <maximumf>, %31, %cst_16 [1] : vector<16x16xf32> to vector<16xf32>
    %33 = vector.shape_cast %32 : vector<16xf32> to vector<16x1xf32>
    %34 = vector.broadcast %33 : vector<16x1xf32> to vector<16x16xf32>
    %35 = arith.subf %34, %31 : vector<16x16xf32>
    %cst_17 = arith.constant 1.000000e+00 : f32
    %36 = vector.broadcast %cst_17 : f32 to vector<16x16xf32>
    %37 = arith.divf %35, %36 : vector<16x16xf32>
    %cst_18 = arith.constant dense<0xFF800000> : vector<16xf32>
    %38 = vector.multi_reduction <maximumf>, %37, %cst_18 [1] : vector<16x16xf32> to vector<16xf32>
    %39 = vector.shape_cast %38 : vector<16xf32> to vector<16x1xf32>
    %40 = vector.broadcast %39 : vector<16x1xf32> to vector<16x16xf32>
    %41 = arith.subf %37, %40 : vector<16x16xf32>
    %42 = math.exp %41 : vector<16x16xf32>
    %cst_19 = arith.constant dense<0.000000e+00> : vector<16xf32>
    %43 = vector.multi_reduction <add>, %42, %cst_19 [1] : vector<16x16xf32> to vector<16xf32>
    %44 = vector.shape_cast %43 : vector<16xf32> to vector<16x1xf32>
    %45 = tpu.reciprocal %44 {approx = true} : vector<16x1xf32> -> vector<16x1xf32>
    %46 = vector.broadcast %45 : vector<16x1xf32> to vector<16x16xf32>
    %47 = arith.mulf %42, %46 : vector<16x16xf32>
    %cst_20 = arith.constant dense<0.000000e+00> : vector<16x256xf32>
    %48 = tpu.matmul %47, %7, %cst_20 {dimension_numbers = #tpu.dot_dimension_numbers<[1], [0], [0], [1], [0, 0, 1, 1], [], []>} : vector<16x16xf32>, vector<16x256xf32>, vector<16x256xf32> -> vector<16x256xf32>
    %49 = vector.broadcast %3 : f32 to vector<16x256xf32>
    %50 = arith.mulf %49, %48 : vector<16x256xf32>
    %51 = arith.addf %50, %7 : vector<16x256xf32>
    %52 = arith.subf %30, %51 : vector<16x256xf32>
    %c0_21 = arith.constant 0 : index
    %c0_22 = arith.constant 0 : index
    %53 = vector.load %arg5[%c0_21, %c0_22] : memref<1x128xf32, #tpu.memory_space<vmem>>, vector<1x128xf32>
    %54 = arith.mulf %52, %52 : vector<16x256xf32>
    %55 = vector.shape_cast %54 : vector<16x256xf32> to vector<1x16x256xf32>
    %cst_23 = arith.constant dense<0.000000e+00> : vector<1xf32>
    %56 = vector.multi_reduction <add>, %55, %cst_23 [1, 2] : vector<1x16x256xf32> to vector<1xf32>
    %57 = vector.shape_cast %56 : vector<1xf32> to vector<1x1x1xf32>
    %58 = vector.extract %57[0, 0, 0] : f32 from vector<1x1x1xf32>
    %59 = vector.broadcast %58 : f32 to vector<1x128xf32>
    %60 = arith.addf %53, %59 : vector<1x128xf32>
    %c0_24 = arith.constant 0 : index
    %c0_25 = arith.constant 0 : index
    %61 = vector.load %arg5[%c0_24, %c0_25] : memref<1x128xf32, #tpu.memory_space<vmem>>, vector<1x128xf32>
    tpu.vector_store %arg5[%c0_24, %c0_25], %60 {strides = array<i32>} : memref<1x128xf32, #tpu.memory_space<vmem>>, vector<1x128xf32>,
    %c1_i32 = arith.constant 1 : i32
    %62 = arith.cmpi eq, %arg0, %c1_i32 : i32
    %63 = arith.extui %62 : i1 to i32
    %c0_i32_26 = arith.constant 0 : i32
    %64 = arith.cmpi ne, %63, %c0_i32_26 : i32
    scf.if %64 {
      %c0_27 = arith.constant 0 : index
      %c0_28 = arith.constant 0 : index
      %65 = vector.load %arg5[%c0_27, %c0_28] : memref<1x128xf32, #tpu.memory_space<vmem>>, vector<1x128xf32>
      %cst_29 = arith.constant 1.22070313E-4 : f32
      %66 = vector.broadcast %cst_29 : f32 to vector<1x128xf32>
      %67 = arith.mulf %65, %66 : vector<1x128xf32>
      %c0_30 = arith.constant 0 : index
      %c0_31 = arith.constant 0 : index
      %68 = vector.load %arg5[%c0_30, %c0_31] : memref<1x128xf32, #tpu.memory_space<vmem>>, vector<1x128xf32>
      tpu.vector_store %arg5[%c0_30, %c0_31], %67 {strides = array<i32>} : memref<1x128xf32, #tpu.memory_space<vmem>>, vector<1x128xf32>,
    } else {
    }
    return
  }
  func.func @transform_0(%arg0: i32) -> i32 {
    %c0_i32 = arith.constant 0 : i32
    %c0_i32_0 = arith.constant 0 : i32
    return %c0_i32 : i32
  }
  func.func @transform_1(%arg0: i32) -> (i32, i32) {
    %c0_i32 = arith.constant 0 : i32
    %c0_i32_0 = arith.constant 0 : i32
    %c0_i32_1 = arith.constant 0 : i32
    return %c0_i32, %c0_i32_0 : i32, i32
  }
  func.func @transform_2(%arg0: i32) -> (i32, i32, i32) {
    %c0_i32 = arith.constant 0 : i32
    %c0_i32_0 = arith.constant 0 : i32
    %c0_i32_1 = arith.constant 0 : i32
    return %arg0, %c0_i32, %c0_i32_0 : i32, i32, i32
  }
  func.func @transform_3(%arg0: i32) -> (i32, i32, i32) {
    %c0_i32 = arith.constant 0 : i32
    %c0_i32_0 = arith.constant 0 : i32
    %c0_i32_1 = arith.constant 0 : i32
    return %arg0, %c0_i32, %c0_i32_0 : i32, i32, i32
  }
  func.func @transform_4(%arg0: i32) -> (i32, i32) {
    %c0_i32 = arith.constant 0 : i32
    %c0_i32_0 = arith.constant 0 : i32
    %c0_i32_1 = arith.constant 0 : i32
    return %c0_i32, %c0_i32_0 : i32, i32
  }
}

</mosaic_0001>

<llo_original>
// kernel: tpu_custom_call.1
$region0: #{tpu_custom_call.1}
  #allocation0 [shape = 'u32[]', space=smem, size = 0x4, offset = 0x4, fixed_abs, tag = 'smem constant byte address 0x4 - core index']
  #allocation1 [shape = 'u32[144,128]{1,0:T(1,128)}', space=vmem, size = 0x12000, scoped, tag = 'internal scratch']
  #allocation2 [shape = 'f32[1]{0:T(128)S(6)}', space=smem, size = 0x200, scoped, tag = 'scoped memory for tpu_custom_call.1']
  %s0 = inlined_call_operand.<no memory space> [shape: f32[1], index: 0, kind: input, shape index: {}]
  %s1 = inlined_call_operand.vmem [shape: f32[16,8], index: 1, kind: input, shape index: {}]
  %s2 = inlined_call_operand.hbm [shape: f32[2,8,256], index: 2, kind: input, shape index: {}]
  %s3 = inlined_call_operand.hbm [shape: f32[2,16,256], index: 3, kind: input, shape index: {}]
  %s4 = inlined_call_operand.hbm [shape: f32[1,128], index: 4, kind: output, shape index: {}]
  %s5 = sld [smem:[#allocation0]]
  $region65: #{tpu_custom_call.1} parent=0
    _
  %s7 = ssub.s32 1, %s5
  %s8 = scalar_select 0, %s7, %s5
  %9 = sst [smem:[#allocation2]] %s0
  $region1: #{tpu_custom_call.1} parent=0
    #allocation3 [shape = 'u8[16384]{0}', space=vmem, size = 0x4000, scoped, tag = 'input window, operand 2']
    #allocation4 [shape = 's32[2]{0}', space=sflag, size = 0x8, scoped, tag = 'scoped memory for tpu_custom_call.1']
    #allocation5 [shape = 's32[2]{0}', space=sflag, size = 0x8, scoped, tag = 'scoped memory for tpu_custom_call.1']
    #allocation6 [shape = 'u8[32768]{0}', space=vmem, size = 0x8000, scoped, tag = 'input window, operand 3']
    #allocation7 [shape = 's32[2]{0}', space=sflag, size = 0x8, scoped, tag = 'scoped memory for tpu_custom_call.1']
    #allocation8 [shape = 'u8[512]{0}', space=vmem, size = 0x400, scoped, tag = 'output window, operand 0, single buffered']
    %10 = vsyncpa [#allocation4], 0
    %s11 = scalar_lea.sflag [#allocation4], 1
    %12 = vsyncpa %s11, 0
    %13 = vsyncpa [#allocation7], 0
    %s14 = scalar_lea.sflag [#allocation7], 1
    %15 = vsyncpa %s14, 0
    %16 = vsyncpa [#allocation5], 0
    loop: start=0, step=1, limit=4
    $region2: #{tpu_custom_call.1} parent=1 // loop_pre_header
      _
    $region3: #{tpu_custom_call.1} parent=1 // loop_header
      %s18 = sphi 0, %s22
      %p19 = scmp.ge.s32.totalorder %s18, 4
      %s26 = sphi 0, %s26
      %s28 = sphi 0, %s26
      %s29 = sphi 0, %s28
      %s43 = sphi 0, %s29
      %s47 = sphi 0, %s47
      %s49 = sphi 0, %s47
      %s50 = sphi 0, %s49
      %s64 = sphi 0, %s50
      %s70 = sphi 0, %s72
      %s73 = sphi 0, %s70
      %s74 = sphi 0, %s73
      %s90 = sphi 0, %s74
      %s96 = sphi 0, %s98
      %s99 = sphi 0, %s96
      %s100 = sphi 0, %s99
      %s116 = sphi 0, %s100
      %s120 = sphi 0, %s120
      %s122 = sphi 0, %s120
      %s123 = sphi 0, %s122
      %s137 = sphi 0, %s123
    $region4: #{tpu_custom_call.1} parent=1 // loop_header_branch
      %21 = sbr.rel (%p19) target = $region8
    $region5: #{tpu_custom_call.1} parent=1 // loop_body
      %s23 = ssub.s32 %s18, 1
      %s24 = ssub.s32 %s18, 2
      %s25 = sadd.s32 %s18, 1
      %s27 = sadd.s32 %s26, 1
      %p30 = scmp.eq.s32.totalorder %s18, 1
      %p31 = scmp.ne.s32.totalorder %s26, %s28
      %p32 = scmp.eq.s32.totalorder %s18, 0
      %p33 = por %p31, %p32
      %p34 = scmp.ne.s32.totalorder %s26, %s28
      %p35 = scmp.eq.s32.totalorder %s23, 1
      %p36 = por %p34, %p35
      %p37 = scmp.ne.s32.totalorder %s28, %s29
      %p38 = scmp.eq.s32.totalorder %s23, 0
      %p39 = por %p37, %p38
      %p40 = scmp.ne.s32.totalorder %s28, %s29
      %p41 = scmp.eq.s32.totalorder %s24, 1
      %p42 = por %p40, %p41
      %p44 = scmp.ne.s32.totalorder %s29, %s43
      %p45 = scmp.eq.s32.totalorder %s24, 0
      %p46 = por %p44, %p45
      %s48 = sadd.s32 %s47, 1
      %p51 = scmp.eq.s32.totalorder %s18, 1
      %p52 = scmp.ne.s32.totalorder %s47, %s49
      %p53 = scmp.eq.s32.totalorder %s18, 0
      %p54 = por %p52, %p53
      %p55 = scmp.ne.s32.totalorder %s47, %s49
      %p56 = scmp.eq.s32.totalorder %s23, 1
      %p57 = por %p55, %p56
      %p58 = scmp.ne.s32.totalorder %s49, %s50
      %p59 = scmp.eq.s32.totalorder %s23, 0
      %p60 = por %p58, %p59
      %p61 = scmp.ne.s32.totalorder %s49, %s50
      %p62 = scmp.eq.s32.totalorder %s24, 1
      %p63 = por %p61, %p62
      %p65 = scmp.ne.s32.totalorder %s50, %s64
      %p66 = scmp.eq.s32.totalorder %s24, 0
      %p67 = por %p65, %p66
      %s68 = ssub.s32 %s18, %s25
      %p69 = scmp.eq.s32.totalorder %s68, 0
      %s71 = sadd.s32 %s70, 1
      %s72 = scalar_select %p69, %s70, %s71
      %p75 = pneg %p69
      %p76 = scmp.eq.s32.totalorder %s18, 1
      %p77 = por %p75, %p76
      %p78 = scmp.ne.s32.totalorder %s70, %s73
      %p79 = scmp.eq.s32.totalorder %s18, 0
      %p80 = por %p78, %p79
      %p81 = scmp.ne.s32.totalorder %s70, %s73
      %p82 = scmp.eq.s32.totalorder %s23, 1
      %p83 = por %p81, %p82
      %p84 = scmp.ne.s32.totalorder %s73, %s74
      %p85 = scmp.eq.s32.totalorder %s23, 0
      %p86 = por %p84, %p85
      %p87 = scmp.ne.s32.totalorder %s73, %s74
      %p88 = scmp.eq.s32.totalorder %s24, 1
      %p89 = por %p87, %p88
      %p91 = scmp.ne.s32.totalorder %s74, %s90
      %p92 = scmp.eq.s32.totalorder %s24, 0
      %p93 = por %p91, %p92
      %s94 = ssub.s32 %s18, %s25
      %p95 = scmp.eq.s32.totalorder %s94, 0
      %s97 = sadd.s32 %s96, 1
      %s98 = scalar_select %p95, %s96, %s97
      %p101 = pneg %p95
      %p102 = scmp.eq.s32.totalorder %s18, 1
      %p103 = por %p101, %p102
      %p104 = scmp.ne.s32.totalorder %s96, %s99
      %p105 = scmp.eq.s32.totalorder %s18, 0
      %p106 = por %p104, %p105
      %p107 = scmp.ne.s32.totalorder %s96, %s99
      %p108 = scmp.eq.s32.totalorder %s23, 1
      %p109 = por %p107, %p108
      %p110 = scmp.ne.s32.totalorder %s99, %s100
      %p111 = scmp.eq.s32.totalorder %s23, 0
      %p112 = por %p110, %p111
      %p113 = scmp.ne.s32.totalorder %s99, %s100
      %p114 = scmp.eq.s32.totalorder %s24, 1
      %p115 = por %p113, %p114
      %p117 = scmp.ne.s32.totalorder %s100, %s116
      %p118 = scmp.eq.s32.totalorder %s24, 0
      %p119 = por %p117, %p118
      %s121 = sadd.s32 %s120, 1
      %p124 = scmp.eq.s32.totalorder %s18, 1
      %p125 = scmp.ne.s32.totalorder %s120, %s122
      %p126 = scmp.eq.s32.totalorder %s18, 0
      %p127 = por %p125, %p126
      %p128 = scmp.ne.s32.totalorder %s120, %s122
      %p129 = scmp.eq.s32.totalorder %s23, 1
      %p130 = por %p128, %p129
      %p131 = scmp.ne.s32.totalorder %s122, %s123
      %p132 = scmp.eq.s32.totalorder %s23, 0
      %p133 = por %p131, %p132
      %p134 = scmp.ne.s32.totalorder %s122, %s123
      %p135 = scmp.eq.s32.totalorder %s24, 1
      %p136 = por %p134, %p135
      %p138 = scmp.ne.s32.totalorder %s123, %s137
      %p139 = scmp.eq.s32.totalorder %s24, 0
      %p140 = por %p138, %p139
      %p141 = scmp.le.s32.totalorder 1, %s18
      %p142 = scmp.lt.s32.totalorder %s18, 3
      %p143 = pnand %p141, %p142
      %p144 = pneg %p143
      // Predicated region
      $region9: #{tpu_custom_call.1} parent=5 // pred_check
        _
      $region10: #{tpu_custom_call.1} parent=5 // pred_check_branch
        %146 = sbr.rel (%p143) target = $region12
      $region11: #{tpu_custom_call.1} parent=5 // pred_region
        %s147 = ssub.s32 %s18, 1
        // Predicated region
        $region13: #{tpu_custom_call.1} parent=11 // pred_check
          %p148 = pneg %p39
        $region14: #{tpu_custom_call.1} parent=11 // pred_check_branch
          %150 = sbr.rel (%p148) target = $region16
        $region15: #{tpu_custom_call.1} parent=11 // pred_region
          _
        $region16: #{tpu_custom_call.1} parent=11 // pred_fallthru
          _
        // Predicated region
        $region17: #{tpu_custom_call.1} parent=11 // pred_check
          %p151 = pneg %p60
        $region18: #{tpu_custom_call.1} parent=11 // pred_check_branch
          %153 = sbr.rel (%p151) target = $region20
        $region19: #{tpu_custom_call.1} parent=11 // pred_region
          _
        $region20: #{tpu_custom_call.1} parent=11 // pred_fallthru
          _
      $region12: #{tpu_custom_call.1} parent=5 // pred_fallthru
        _
      %p154 = scmp.lt.s32.totalorder %s18, 2
      // Predicated region
      $region21: #{tpu_custom_call.1} parent=5 // pred_check
        %p155 = pneg %p154
      $region22: #{tpu_custom_call.1} parent=5 // pred_check_branch
        %157 = sbr.rel (%p155) target = $region24
      $region23: #{tpu_custom_call.1} parent=5 // pred_region
        // Predicated region
        $region25: #{tpu_custom_call.1} parent=23 // pred_check
          %p158 = pneg %p80
        $region26: #{tpu_custom_call.1} parent=23 // pred_check_branch
          %160 = sbr.rel (%p158) target = $region28
        $region27: #{tpu_custom_call.1} parent=23 // pred_region
          %s161 = sand.u32 %s70, 1
          %s162 = scalar_lea.sflag [#allocation4], %s161
          %s163 = sand.u32 %s70, 1
          %s164 = smul.addr %s163, 16
          %s165 = scalar_lea.vmem [#allocation3], %s164
          %s167 = ssub.s32 256, 256
          %168 = vsyncadd %s162, %s167
          %s169 = smul.addr %s18, 2
          %s170 = smul.addr %s169, 128
          %s171 = scalar_lea.hbm %s2, %s170
          %s173 = sshll.u32 %s165, 4
          %s174 = int_to_ptr.vmem [resolvable:$true] %s173
          %176 = dma.hbm_to_vmem [thread:$0]  %s171, 256, %s174, %s162
        $region28: #{tpu_custom_call.1} parent=23 // pred_fallthru
          _
        // Predicated region
        $region29: #{tpu_custom_call.1} parent=23 // pred_check
          %p177 = pneg %p106
        $region30: #{tpu_custom_call.1} parent=23 // pred_check_branch
          %179 = sbr.rel (%p177) target = $region32
        $region31: #{tpu_custom_call.1} parent=23 // pred_region
          %s180 = sand.u32 %s96, 1
          %s181 = scalar_lea.sflag [#allocation7], %s180
          %s182 = sand.u32 %s96, 1
          %s183 = smul.addr %s182, 32
          %s184 = scalar_lea.vmem [#allocation6], %s183
          %s186 = ssub.s32 512, 512
          %187 = vsyncadd %s181, %s186
          %s188 = smul.addr %s18, 4
          %s189 = smul.addr %s188, 128
          %s190 = scalar_lea.hbm %s3, %s189
          %s191 = sshll.u32 %s184, 4
          %s192 = int_to_ptr.vmem [resolvable:$true] %s191
          %197 = dma.hbm_to_vmem [thread:$0]  %s190, 512, %s192, %s181, 256, 256, 16
        $region32: #{tpu_custom_call.1} parent=23 // pred_fallthru
          _
      $region24: #{tpu_custom_call.1} parent=5 // pred_fallthru
        _
      %p198 = scmp.le.s32.totalorder 1, %s18
      %p199 = scmp.lt.s32.totalorder %s18, 3
      %p200 = pnand %p198, %p199
      %p201 = pneg %p200
      // Predicated region
      $region33: #{tpu_custom_call.1} parent=5 // pred_check
        _
      $region34: #{tpu_custom_call.1} parent=5 // pred_check_branch
        %203 = sbr.rel (%p200) target = $region36
      $region35: #{tpu_custom_call.1} parent=5 // pred_region
        %s204 = ssub.s32 %s18, 1
        %s205 = sand.u32 %s73, 1
        %s206 = scalar_lea.sflag [#allocation4], %s205
        %s207 = sand.u32 %s73, 1
        %s208 = smul.addr %s207, 16
        %s209 = scalar_lea.vmem [#allocation3], %s208
        // Predicated region
        $region37: #{tpu_custom_call.1} parent=35 // pred_check
          %p210 = pneg %p86
        $region38: #{tpu_custom_call.1} parent=35 // pred_check_branch
          %212 = sbr.rel (%p210) target = $region40
        $region39: #{tpu_custom_call.1} parent=35 // pred_region
          %213 = dma.done %s206, 256
        $region40: #{tpu_custom_call.1} parent=35 // pred_fallthru
          _
        %s214 = sand.u32 %s99, 1
        %s215 = scalar_lea.sflag [#allocation7], %s214
        %s216 = sand.u32 %s99, 1
        %s217 = smul.addr %s216, 32
        %s218 = scalar_lea.vmem [#allocation6], %s217
        // Predicated region
        $region41: #{tpu_custom_call.1} parent=35 // pred_check
          %p219 = pneg %p112
        $region42: #{tpu_custom_call.1} parent=35 // pred_check_branch
          %221 = sbr.rel (%p219) target = $region44
        $region43: #{tpu_custom_call.1} parent=35 // pred_region
          %222 = dma.done %s215, 512
        $region44: #{tpu_custom_call.1} parent=35 // pred_fallthru
          _
        %p223 = pneg %p39
        %p224 = pneg %p36
        %p225 = pneg %p60
        %p226 = pneg %p57
        %s227 = sand.u32 %s73, 1
        %s228 = scalar_lea.sflag [#allocation4], %s227
        %s229 = sand.u32 %s73, 1
        %s230 = smul.addr %s229, 16
        %s231 = scalar_lea.vmem [#allocation3], %s230
        %p232 = pneg %p86
        %p233 = pneg %p83
        %s234 = sand.u32 %s99, 1
        %s235 = scalar_lea.sflag [#allocation7], %s234
        %s236 = sand.u32 %s99, 1
        %s237 = smul.addr %s236, 32
        %s238 = scalar_lea.vmem [#allocation6], %s237
        %p239 = pneg %p112
        %p240 = pneg %p109
        %p241 = pneg %p133
        %p242 = pneg %p130
        %p243 = scmp.eq.s32.totalorder %s23, 0
        // Predicated region
        $region45: #{tpu_custom_call.1} parent=35 // pred_check
          %p244 = pneg %p243
        $region46: #{tpu_custom_call.1} parent=35 // pred_check_branch
          %246 = sbr.rel (%p244) target = $region48
        $region47: #{tpu_custom_call.1} parent=35 // pred_region
          %247 = vst [vmem:[#allocation8] sm:$0x1] 0.0
        $region48: #{tpu_custom_call.1} parent=35 // pred_fallthru
          _
        %s248 = sld [smem:[#allocation2]]
        %v249 = vld [vmem:[%s209] sm:$0xff]
        %v250 = vld [vmem:[%s209 + $0x8] sm:$0xff]
        %v251 = vld [vmem:[%s218] sm:$0xff]
        %v252 = vld [vmem:[%s218 + $0x8] sm:$0xff]
        %v253 = vld [vmem:[%s218 + $0x10] sm:$0xff]
        %v254 = vld [vmem:[%s218 + $0x18] sm:$0xff]
        %v255 = vld [vmem:[%s1] sm:$0xff]
        %v256 = vld [vmem:[%s1 + $0x8] sm:$0xff]
        %vm257 = vcmask 64512
        %v259 = vsel %vm257, %v255, 0
        %v262 = vsel %vm257, %v256, 0
        %264 = vmatprep.subr.mxu0 %v250
        %265 = vmatpush1.msra.mxu0 %v249
        %266 = vmatprep.subr.mxu0 0.0
        %267 = vmatpush1.msra.mxu0 0.0
        %268 = vmatprep.subr.mxu0 0.0
        %269 = vmatpush1.msra.mxu0 0.0
        %270 = vmatprep.subr.mxu0 0.0
        %271 = vmatpush1.msra.mxu0 0.0
        %272 = vmatprep.subr.mxu0 0.0
        %273 = vmatpush1.msra.mxu0 0.0
        %274 = vmatprep.subr.mxu0 0.0
        %275 = vmatpush1.msra.mxu0 0.0
        %276 = vmatprep.subr.mxu0 0.0
        %277 = vmatpush1.msra.mxu0 0.0
        %278 = vmatprep.subr.mxu0 0.0
        %279 = vmatpush1.msra.mxu0 0.0
        %280 = vmatprep.subr.mxu0 0.0
        %281 = vmatpush1.msra.mxu0 0.0
        %282 = vmatprep.subr.mxu0 0.0
        %283 = vmatpush1.msra.mxu0 0.0
        %284 = vmatprep.subr.mxu0 0.0
        %285 = vmatpush1.msra.mxu0 0.0
        %286 = vmatprep.subr.mxu0 0.0
        %287 = vmatpush1.msra.mxu0 0.0
        %288 = vmatprep.subr.mxu0 0.0
        %289 = vmatpush1.msra.mxu0 0.0
        %290 = vmatprep.subr.mxu0 0.0
        %291 = vmatpush1.msra.mxu0 0.0
        %292 = vmatprep.subr.mxu0 0.0
        %293 = vmatpush1.msra.mxu0 0.0
        %294 = vmatprep.subr.mxu0 0.0
        %295 = vmatpush1.msra.mxu0 0.0
        %296 = vmatprep.subr.mxu0 0.0
        %297 = vmatpush1.msra.mxu0 0.0
        %298 = vmatprep.subr.mxu0 0.0
        %299 = vmatpush1.msra.mxu0 0.0
        %300 = vmatprep.subr.mxu0 0.0
        %301 = vmatpush1.msra.mxu0 0.0
        %302 = vmatprep.subr.mxu0 0.0
        %303 = vmatpush1.msra.mxu0 0.0
        %304 = vmatprep.subr.mxu0 0.0
        %305 = vmatpush1.msra.mxu0 0.0
        %306 = vmatprep.subr.mxu0 0.0
        %307 = vmatpush1.msra.mxu0 0.0
        %308 = vmatprep.subr.mxu0 0.0
        %309 = vmatpush1.msra.mxu0 0.0
        %310 = vmatprep.subr.mxu0 0.0
        %311 = vmatpush1.msra.mxu0 0.0
        %312 = vmatprep.subr.mxu0 0.0
        %313 = vmatpush1.msra.mxu0 0.0
        %314 = vmatprep.subr.mxu0 0.0
        %315 = vmatpush1.msra.mxu0 0.0
        %316 = vmatprep.subr.mxu0 0.0
        %317 = vmatpush1.msra.mxu0 0.0
        %318 = vmatprep.subr.mxu0 0.0
        %319 = vmatpush1.msra.mxu0 0.0
        %320 = vmatprep.subr.mxu0 0.0
        %321 = vmatpush1.msra.mxu0 0.0
        %322 = vmatprep.subr.mxu0 0.0
        %323 = vmatpush1.msra.mxu0 0.0
        %324 = vmatprep.subr.mxu0 0.0
        %325 = vmatpush1.msra.mxu0 0.0
        %326 = vmatprep.subr.mxu0 0.0
        %327 = vmatpush1.msra.mxu0 0.0
        %328 = vmatprep.mubr.f32.mxu0 0.0
        %329 = vmatmul.mubr.f32.gmra.mrb[0].mxu0 %v259
        %v330 = vpop.f32.mrb[0].mxu0
        %v331 = vadd.f32 0.0, %v330
        %v332 = vpop.f32.mrb[0].mxu0
        %v333 = vadd.f32 0.0, %v332
        %334 = vmatprep.mubr.f32.mxu0 0.0
        %335 = vmatmul.mubr.f32.gmra.mrb[0].mxu0 %v262
        %v336 = vpop.f32.mrb[0].mxu0
        %v337 = vadd.f32 0.0, %v336
        %v338 = vpop.f32.mrb[0].mxu0
        %v339 = vadd.f32 0.0, %v338
        %340 = vdwg.mxu0
        %341 = vmatprep.subr.mxu0 %v333
        %342 = vmatpush1.xpose.msra.mxu0 %v331
        %343 = vmatprep.subr.mxu0 %v339
        %344 = vmatpush1.xpose.msra.mxu0 %v337
        %345 = vmatprep.subr.mxu0 0.0
        %346 = vmatpush1.xpose.msra.mxu0 0.0
        %347 = vmatprep.subr.mxu0 0.0
        %348 = vmatpush1.xpose.msra.mxu0 0.0
        %349 = vmatprep.subr.mxu0 0.0
        %350 = vmatpush1.xpose.msra.mxu0 0.0
        %351 = vmatprep.subr.mxu0 0.0
        %352 = vmatpush1.xpose.msra.mxu0 0.0
        %353 = vmatprep.subr.mxu0 0.0
        %354 = vmatpush1.xpose.msra.mxu0 0.0
        %355 = vmatprep.subr.mxu0 0.0
        %356 = vmatpush1.xpose.msra.mxu0 0.0
        %357 = vmatprep.subr.mxu0 0.0
        %358 = vmatpush1.xpose.msra.mxu0 0.0
        %359 = vmatprep.subr.mxu0 0.0
        %360 = vmatpush1.xpose.msra.mxu0 0.0
        %361 = vmatprep.subr.mxu0 0.0
        %362 = vmatpush1.xpose.msra.mxu0 0.0
        %363 = vmatprep.subr.mxu0 0.0
        %364 = vmatpush1.xpose.msra.mxu0 0.0
        %365 = vmatprep.subr.mxu0 0.0
        %366 = vmatpush1.xpose.msra.mxu0 0.0
        %367 = vmatprep.subr.mxu0 0.0
        %368 = vmatpush1.xpose.msra.mxu0 0.0
        %369 = vmatprep.subr.mxu0 0.0
        %370 = vmatpush1.xpose.msra.mxu0 0.0
        %371 = vmatprep.subr.mxu0 0.0
        %372 = vmatpush1.xpose.msra.mxu0 0.0
        %373 = vmatprep.subr.mxu0 0.0
        %374 = vmatpush1.xpose.msra.mxu0 0.0
        %375 = vmatprep.subr.mxu0 0.0
        %376 = vmatpush1.xpose.msra.mxu0 0.0
        %377 = vmatprep.subr.mxu0 0.0
        %378 = vmatpush1.xpose.msra.mxu0 0.0
        %379 = vmatprep.subr.mxu0 0.0
        %380 = vmatpush1.xpose.msra.mxu0 0.0
        %381 = vmatprep.subr.mxu0 0.0
        %382 = vmatpush1.xpose.msra.mxu0 0.0
        %383 = vmatprep.subr.mxu0 0.0
        %384 = vmatpush1.xpose.msra.mxu0 0.0
        %385 = vmatprep.subr.mxu0 0.0
        %386 = vmatpush1.xpose.msra.mxu0 0.0
        %387 = vmatprep.subr.mxu0 0.0
        %388 = vmatpush1.xpose.msra.mxu0 0.0
        %389 = vmatprep.subr.mxu0 0.0
        %390 = vmatpush1.xpose.msra.mxu0 0.0
        %391 = vmatprep.subr.mxu0 0.0
        %392 = vmatpush1.xpose.msra.mxu0 0.0
        %393 = vmatprep.subr.mxu0 0.0
        %394 = vmatpush1.xpose.msra.mxu0 0.0
        %395 = vmatprep.subr.mxu0 0.0
        %396 = vmatpush1.xpose.msra.mxu0 0.0
        %397 = vmatprep.subr.mxu0 0.0
        %398 = vmatpush1.xpose.msra.mxu0 0.0
        %399 = vmatprep.subr.mxu0 0.0
        %400 = vmatpush1.xpose.msra.mxu0 0.0
        %401 = vmatprep.subr.mxu0 0.0
        %402 = vmatpush1.xpose.msra.mxu0 0.0
        %403 = vmatprep.subr.mxu0 0.0
        %404 = vmatpush1.xpose.msra.mxu0 0.0
        %405 = vmatprep.mubr.f32.mxu0 %v333
        %406 = vmatmul.mubr.f32.gmra.mrb[0].mxu0 %v331
        %v407 = vpop.f32.mrb[0].mxu0
        %v408 = vadd.f32 0.0, %v407
        %v409 = vpop.f32.mrb[0].mxu0
        %410 = vmatprep.mubr.f32.mxu0 %v339
        %411 = vmatmul.mubr.f32.gmra.mrb[0].mxu0 %v337
        %v412 = vpop.f32.mrb[0].mxu0
        %v413 = vadd.f32 0.0, %v412
        %v414 = vpop.f32.mrb[0].mxu0
        %415 = vdwg.mxu0
        %vm416 = vcmask 130048
        %v417 = vsel %vm416, %v408, -inf
        %418 = vmax.xlane.f32.xlu0 %v417
        %v419 = vpop.xlane.xlu0 %418
        %v420 = vsel %vm416, %v413, -inf
        %421 = vmax.xlane.f32.xlu0 %v420
        %v422 = vpop.xlane.xlu0 %421
        %v423 = vsub.f32 %v419, %v408
        %v424 = vsub.f32 %v422, %v413
        %v425 = vsel %vm416, %v423, -inf
        %426 = vmax.xlane.f32.xlu0 %v425
        %v427 = vpop.xlane.xlu0 %426
        %v428 = vsel %vm416, %v424, -inf
        %429 = vmax.xlane.f32.xlu0 %v428
        %v430 = vpop.xlane.xlu0 %429
        %v431 = vsub.f32 %v423, %v427
        %v432 = vsub.f32 %v424, %v430
        %v433 = vmul.f32 %v431, 1.442695
        %v434 = vpow.pop %v433
        %v435 = vmul.f32 %v432, 1.442695
        %v436 = vpow.pop %v435
        %v437 = vsel %vm416, %v434, 0.0
        %438 = vadd.xlane.f32.xlu0 %v437
        %v439 = vpop.xlane.xlu0 %438
        %v440 = vsel %vm416, %v436, 0.0
        %441 = vadd.xlane.f32.xlu0 %v440
        %v442 = vpop.xlane.xlu0 %441
        %v443 = vrcp.pop %v439
        %v444 = vrcp.pop %v442
        %v445 = vmul.f32 %v434, %v443
        %v446 = vmul.f32 %v436, %v444
        %v448 = vsel %vm416, %v445, 0
        %v451 = vsel %vm416, %v446, 0
        %453 = vmatprep.subr.mxu0 %v333
        %454 = vmatpush1.msra.mxu0 %v331
        %455 = vmatprep.subr.mxu0 %v339
        %456 = vmatpush1.msra.mxu0 %v337
        %457 = vmatprep.subr.mxu0 0.0
        %458 = vmatpush1.msra.mxu0 0.0
        %459 = vmatprep.subr.mxu0 0.0
        %460 = vmatpush1.msra.mxu0 0.0
        %461 = vmatprep.subr.mxu0 0.0
        %462 = vmatpush1.msra.mxu0 0.0
        %463 = vmatprep.subr.mxu0 0.0
        %464 = vmatpush1.msra.mxu0 0.0
        %465 = vmatprep.subr.mxu0 0.0
        %466 = vmatpush1.msra.mxu0 0.0
        %467 = vmatprep.subr.mxu0 0.0
        %468 = vmatpush1.msra.mxu0 0.0
        %469 = vmatprep.subr.mxu0 0.0
        %470 = vmatpush1.msra.mxu0 0.0
        %471 = vmatprep.subr.mxu0 0.0
        %472 = vmatpush1.msra.mxu0 0.0
        %473 = vmatprep.subr.mxu0 0.0
        %474 = vmatpush1.msra.mxu0 0.0
        %475 = vmatprep.subr.mxu0 0.0
        %476 = vmatpush1.msra.mxu0 0.0
        %477 = vmatprep.subr.mxu0 0.0
        %478 = vmatpush1.msra.mxu0 0.0
        %479 = vmatprep.subr.mxu0 0.0
        %480 = vmatpush1.msra.mxu0 0.0
        %481 = vmatprep.subr.mxu0 0.0
        %482 = vmatpush1.msra.mxu0 0.0
        %483 = vmatprep.subr.mxu0 0.0
        %484 = vmatpush1.msra.mxu0 0.0
        %485 = vmatprep.subr.mxu0 0.0
        %486 = vmatpush1.msra.mxu0 0.0
        %487 = vmatprep.subr.mxu0 0.0
        %488 = vmatpush1.msra.mxu0 0.0
        %489 = vmatprep.subr.mxu0 0.0
        %490 = vmatpush1.msra.mxu0 0.0
        %491 = vmatprep.subr.mxu0 0.0
        %492 = vmatpush1.msra.mxu0 0.0
        %493 = vmatprep.subr.mxu0 0.0
        %494 = vmatpush1.msra.mxu0 0.0
        %495 = vmatprep.subr.mxu0 0.0
        %496 = vmatpush1.msra.mxu0 0.0
        %497 = vmatprep.subr.mxu0 0.0
        %498 = vmatpush1.msra.mxu0 0.0
        %499 = vmatprep.subr.mxu0 0.0
        %500 = vmatpush1.msra.mxu0 0.0
        %501 = vmatprep.subr.mxu0 0.0
        %502 = vmatpush1.msra.mxu0 0.0
        %503 = vmatprep.subr.mxu0 0.0
        %504 = vmatpush1.msra.mxu0 0.0
        %505 = vmatprep.subr.mxu0 0.0
        %506 = vmatpush1.msra.mxu0 0.0
        %507 = vmatprep.subr.mxu0 0.0
        %508 = vmatpush1.msra.mxu0 0.0
        %509 = vmatprep.subr.mxu0 0.0
        %510 = vmatpush1.msra.mxu0 0.0
        %511 = vmatprep.subr.mxu0 0.0
        %512 = vmatpush1.msra.mxu0 0.0
        %513 = vmatprep.subr.mxu0 0.0
        %514 = vmatpush1.msra.mxu0 0.0
        %515 = vmatprep.subr.mxu0 0.0
        %516 = vmatpush1.msra.mxu0 0.0
        %517 = vmatprep.mubr.f32.mxu0 0.0
        %518 = vmatmul.mubr.f32.gmra.mrb[0].mxu0 %v448
        %v519 = vpop.f32.mrb[0].mxu0
        %v520 = vadd.f32 0.0, %v519
        %v521 = vpop.f32.mrb[0].mxu0
        %v522 = vadd.f32 0.0, %v521
        %523 = vmatprep.mubr.f32.mxu0 0.0
        %524 = vmatmul.mubr.f32.gmra.mrb[0].mxu0 %v451
        %v525 = vpop.f32.mrb[0].mxu0
        %v526 = vadd.f32 0.0, %v525
        %v527 = vpop.f32.mrb[0].mxu0
        %v528 = vadd.f32 0.0, %v527
        %529 = vdwg.mxu0
        %v530 = vstv %s248
        %v531 = vmul.f32 %v530, %v520
        %v532 = vmul.f32 %v530, %v522
        %v533 = vmul.f32 %v530, %v526
        %v534 = vmul.f32 %v530, %v528
        %v535 = vadd.f32 %v531, %v331
        %v536 = vadd.f32 %v532, %v333
        %v537 = vadd.f32 %v533, %v337
        %v538 = vadd.f32 %v534, %v339
        %539 = vmatprep.subr.mxu0 %v252
        %540 = vmatpush1.xpose.msra.mxu0 %v251
        %541 = vmatprep.subr.mxu0 %v254
        %542 = vmatpush1.xpose.msra.mxu0 %v253
        %543 = vmatprep.subr.mxu0 0.0
        %544 = vmatpush1.xpose.msra.mxu0 0.0
        %545 = vmatprep.subr.mxu0 0.0
        %546 = vmatpush1.xpose.msra.mxu0 0.0
        %547 = vmatprep.subr.mxu0 0.0
        %548 = vmatpush1.xpose.msra.mxu0 0.0
        %549 = vmatprep.subr.mxu0 0.0
        %550 = vmatpush1.xpose.msra.mxu0 0.0
        %551 = vmatprep.subr.mxu0 0.0
        %552 = vmatpush1.xpose.msra.mxu0 0.0
        %553 = vmatprep.subr.mxu0 0.0
        %554 = vmatpush1.xpose.msra.mxu0 0.0
        %555 = vmatprep.subr.mxu0 0.0
        %556 = vmatpush1.xpose.msra.mxu0 0.0
        %557 = vmatprep.subr.mxu0 0.0
        %558 = vmatpush1.xpose.msra.mxu0 0.0
        %559 = vmatprep.subr.mxu0 0.0
        %560 = vmatpush1.xpose.msra.mxu0 0.0
        %561 = vmatprep.subr.mxu0 0.0
        %562 = vmatpush1.xpose.msra.mxu0 0.0
        %563 = vmatprep.subr.mxu0 0.0
        %564 = vmatpush1.xpose.msra.mxu0 0.0
        %565 = vmatprep.subr.mxu0 0.0
        %566 = vmatpush1.xpose.msra.mxu0 0.0
        %567 = vmatprep.subr.mxu0 0.0
        %568 = vmatpush1.xpose.msra.mxu0 0.0
        %569 = vmatprep.subr.mxu0 0.0
        %570 = vmatpush1.xpose.msra.mxu0 0.0
        %571 = vmatprep.subr.mxu0 0.0
        %572 = vmatpush1.xpose.msra.mxu0 0.0
        %573 = vmatprep.subr.mxu0 0.0
        %574 = vmatpush1.xpose.msra.mxu0 0.0
        %575 = vmatprep.subr.mxu0 0.0
        %576 = vmatpush1.xpose.msra.mxu0 0.0
        %577 = vmatprep.subr.mxu0 0.0
        %578 = vmatpush1.xpose.msra.mxu0 0.0
        %579 = vmatprep.subr.mxu0 0.0
        %580 = vmatpush1.xpose.msra.mxu0 0.0
        %581 = vmatprep.subr.mxu0 0.0
        %582 = vmatpush1.xpose.msra.mxu0 0.0
        %583 = vmatprep.subr.mxu0 0.0
        %584 = vmatpush1.xpose.msra.mxu0 0.0
        %585 = vmatprep.subr.mxu0 0.0
        %586 = vmatpush1.xpose.msra.mxu0 0.0
        %587 = vmatprep.subr.mxu0 0.0
        %588 = vmatpush1.xpose.msra.mxu0 0.0
        %589 = vmatprep.subr.mxu0 0.0
        %590 = vmatpush1.xpose.msra.mxu0 0.0
        %591 = vmatprep.subr.mxu0 0.0
        %592 = vmatpush1.xpose.msra.mxu0 0.0
        %593 = vmatprep.subr.mxu0 0.0
        %594 = vmatpush1.xpose.msra.mxu0 0.0
        %595 = vmatprep.subr.mxu0 0.0
        %596 = vmatpush1.xpose.msra.mxu0 0.0
        %597 = vmatprep.subr.mxu0 0.0
        %598 = vmatpush1.xpose.msra.mxu0 0.0
        %599 = vmatprep.subr.mxu0 0.0
        %600 = vmatpush1.xpose.msra.mxu0 0.0
        %601 = vmatprep.subr.mxu0 0.0
        %602 = vmatpush1.xpose.msra.mxu0 0.0
        %603 = vmatprep.mubr.f32.mxu0 %v252
        %604 = vmatmul.mubr.f32.gmra.mrb[0].mxu0 %v251
        %v605 = vpop.f32.mrb[0].mxu0
        %v606 = vadd.f32 0.0, %v605
        %v607 = vpop.f32.mrb[0].mxu0
        %608 = vmatprep.mubr.f32.mxu0 %v254
        %609 = vmatmul.mubr.f32.gmra.mrb[0].mxu0 %v253
        %v610 = vpop.f32.mrb[0].mxu0
        %v611 = vadd.f32 0.0, %v610
        %v612 = vpop.f32.mrb[0].mxu0
        %613 = vdwg.mxu0
        %v614 = vsel %vm416, %v606, -inf
        %615 = vmax.xlane.f32.xlu0 %v614
        %v616 = vpop.xlane.xlu0 %615
        %v617 = vsel %vm416, %v611, -inf
        %618 = vmax.xlane.f32.xlu0 %v617
        %v619 = vpop.xlane.xlu0 %618
        %v620 = vsub.f32 %v616, %v606
        %v621 = vsub.f32 %v619, %v611
        %v622 = vsel %vm416, %v620, -inf
        %623 = vmax.xlane.f32.xlu0 %v622
        %v624 = vpop.xlane.xlu0 %623
        %v625 = vsel %vm416, %v621, -inf
        %626 = vmax.xlane.f32.xlu0 %v625
        %v627 = vpop.xlane.xlu0 %626
        %v628 = vsub.f32 %v620, %v624
        %v629 = vsub.f32 %v621, %v627
        %v630 = vmul.f32 %v628, 1.442695
        %v631 = vpow.pop %v630
        %v632 = vmul.f32 %v629, 1.442695
        %v633 = vpow.pop %v632
        %v634 = vsel %vm416, %v631, 0.0
        %635 = vadd.xlane.f32.xlu0 %v634
        %v636 = vpop.xlane.xlu0 %635
        %v637 = vsel %vm416, %v633, 0.0
        %638 = vadd.xlane.f32.xlu0 %v637
        %v639 = vpop.xlane.xlu0 %638
        %v640 = vrcp.pop %v636
        %v641 = vrcp.pop %v639
        %v642 = vmul.f32 %v631, %v640
        %v643 = vmul.f32 %v633, %v641
        %v645 = vsel %vm416, %v642, 0
        %v648 = vsel %vm416, %v643, 0
        %650 = vmatprep.subr.mxu0 %v252
        %651 = vmatpush1.msra.mxu0 %v251
        %652 = vmatprep.subr.mxu0 %v254
        %653 = vmatpush1.msra.mxu0 %v253
        %654 = vmatprep.subr.mxu0 0.0
        %655 = vmatpush1.msra.mxu0 0.0
        %656 = vmatprep.subr.mxu0 0.0
        %657 = vmatpush1.msra.mxu0 0.0
        %658 = vmatprep.subr.mxu0 0.0
        %659 = vmatpush1.msra.mxu0 0.0
        %660 = vmatprep.subr.mxu0 0.0
        %661 = vmatpush1.msra.mxu0 0.0
        %662 = vmatprep.subr.mxu0 0.0
        %663 = vmatpush1.msra.mxu0 0.0
        %664 = vmatprep.subr.mxu0 0.0
        %665 = vmatpush1.msra.mxu0 0.0
        %666 = vmatprep.subr.mxu0 0.0
        %667 = vmatpush1.msra.mxu0 0.0
        %668 = vmatprep.subr.mxu0 0.0
        %669 = vmatpush1.msra.mxu0 0.0
        %670 = vmatprep.subr.mxu0 0.0
        %671 = vmatpush1.msra.mxu0 0.0
        %672 = vmatprep.subr.mxu0 0.0
        %673 = vmatpush1.msra.mxu0 0.0
        %674 = vmatprep.subr.mxu0 0.0
        %675 = vmatpush1.msra.mxu0 0.0
        %676 = vmatprep.subr.mxu0 0.0
        %677 = vmatpush1.msra.mxu0 0.0
        %678 = vmatprep.subr.mxu0 0.0
        %679 = vmatpush1.msra.mxu0 0.0
        %680 = vmatprep.subr.mxu0 0.0
        %681 = vmatpush1.msra.mxu0 0.0
        %682 = vmatprep.subr.mxu0 0.0
        %683 = vmatpush1.msra.mxu0 0.0
        %684 = vmatprep.subr.mxu0 0.0
        %685 = vmatpush1.msra.mxu0 0.0
        %686 = vmatprep.subr.mxu0 0.0
        %687 = vmatpush1.msra.mxu0 0.0
        %688 = vmatprep.subr.mxu0 0.0
        %689 = vmatpush1.msra.mxu0 0.0
        %690 = vmatprep.subr.mxu0 0.0
        %691 = vmatpush1.msra.mxu0 0.0
        %692 = vmatprep.subr.mxu0 0.0
        %693 = vmatpush1.msra.mxu0 0.0
        %694 = vmatprep.subr.mxu0 0.0
        %695 = vmatpush1.msra.mxu0 0.0
        %696 = vmatprep.subr.mxu0 0.0
        %697 = vmatpush1.msra.mxu0 0.0
        %698 = vmatprep.subr.mxu0 0.0
        %699 = vmatpush1.msra.mxu0 0.0
        %700 = vmatprep.subr.mxu0 0.0
        %701 = vmatpush1.msra.mxu0 0.0
        %702 = vmatprep.subr.mxu0 0.0
        %703 = vmatpush1.msra.mxu0 0.0
        %704 = vmatprep.subr.mxu0 0.0
        %705 = vmatpush1.msra.mxu0 0.0
        %706 = vmatprep.subr.mxu0 0.0
        %707 = vmatpush1.msra.mxu0 0.0
        %708 = vmatprep.subr.mxu0 0.0
        %709 = vmatpush1.msra.mxu0 0.0
        %710 = vmatprep.subr.mxu0 0.0
        %711 = vmatpush1.msra.mxu0 0.0
        %712 = vmatprep.subr.mxu0 0.0
        %713 = vmatpush1.msra.mxu0 0.0
        %714 = vmatprep.mubr.f32.mxu0 0.0
        %715 = vmatmul.mubr.f32.gmra.mrb[0].mxu0 %v645
        %v716 = vpop.f32.mrb[0].mxu0
        %v717 = vadd.f32 0.0, %v716
        %v718 = vpop.f32.mrb[0].mxu0
        %v719 = vadd.f32 0.0, %v718
        %720 = vmatprep.mubr.f32.mxu0 0.0
        %721 = vmatmul.mubr.f32.gmra.mrb[0].mxu0 %v648
        %v722 = vpop.f32.mrb[0].mxu0
        %v723 = vadd.f32 0.0, %v722
        %v724 = vpop.f32.mrb[0].mxu0
        %v725 = vadd.f32 0.0, %v724
        %726 = vdwg.mxu0
        %v727 = vmul.f32 %v530, %v717
        %v728 = vmul.f32 %v530, %v719
        %v729 = vmul.f32 %v530, %v723
        %v730 = vmul.f32 %v530, %v725
        %v731 = vadd.f32 %v727, %v251
        %v732 = vadd.f32 %v728, %v252
        %v733 = vadd.f32 %v729, %v253
        %v734 = vadd.f32 %v730, %v254
        %v735 = vsub.f32 %v535, %v731
        %v736 = vsub.f32 %v536, %v732
        %v737 = vsub.f32 %v537, %v733
        %v738 = vsub.f32 %v538, %v734
        %v739 = vld [vmem:[#allocation8] sm:$0x1]
        %v740 = vmul.f32 %v735, %v735
        %v741 = vmul.f32 %v736, %v736
        %v742 = vmul.f32 %v737, %v737
        %v743 = vmul.f32 %v738, %v738
        %v744 = vadd.f32 %v740, %v741
        %v745 = vadd.f32 %v744, %v742
        %v746 = vadd.f32 %v745, %v743
        %747 = vadd.xlane.f32.xlu0 %v746
        %v748 = vpop.xlane.xlu0 %747
        %v749 = vrot.slane %v748, 4
        %v750 = vadd.f32 %v748, %v749
        %v751 = vrot.slane %v750, 2
        %v752 = vadd.f32 %v750, %v751
        %v753 = vrot.slane %v752, 1
        %v754 = vadd.f32 %v752, %v753
        %s755 = vtos %v754
        %v756 = vstv %s755
        %v757 = vadd.f32 %v739, %v756
        %758 = vst [vmem:[#allocation8] sm:$0x1] %v757
        %p759 = scmp.eq.s32.totalorder %s23, 1
        // Predicated region
        $region49: #{tpu_custom_call.1} parent=35 // pred_check
          %p760 = pneg %p759
        $region50: #{tpu_custom_call.1} parent=35 // pred_check_branch
          %762 = sbr.rel (%p760) target = $region52
        $region51: #{tpu_custom_call.1} parent=35 // pred_region
          %v763 = vld [vmem:[#allocation8] sm:$0x1]
          %v764 = vmul.f32 %v763, 0.00012207031
          %765 = vst [vmem:[#allocation8] sm:$0x1] %v764
        $region52: #{tpu_custom_call.1} parent=35 // pred_fallthru
          _
        // Predicated region
        $region53: #{tpu_custom_call.1} parent=35 // pred_check
          %p766 = pneg %p130
        $region54: #{tpu_custom_call.1} parent=35 // pred_check_branch
          %768 = sbr.rel (%p766) target = $region56
        $region55: #{tpu_custom_call.1} parent=35 // pred_region
          %s770 = ssub.s32 16, 16
          %771 = vsyncadd [#allocation5], %s770
          %s773 = sshll.u32 [#allocation8], 4
          %s774 = int_to_ptr.vmem [resolvable:$true] %s773
          %776 = dma.vmem_to_hbm [thread:$0]  %s774, 16, %s4, [#allocation5]
        $region56: #{tpu_custom_call.1} parent=35 // pred_fallthru
          _
        // Predicated region
        $region57: #{tpu_custom_call.1} parent=35 // pred_check
          %p777 = pneg %p130
        $region58: #{tpu_custom_call.1} parent=35 // pred_check_branch
          %779 = sbr.rel (%p777) target = $region60
        $region59: #{tpu_custom_call.1} parent=35 // pred_region
          %780 = dma.done [#allocation5], 16
        $region60: #{tpu_custom_call.1} parent=35 // pred_fallthru
          _
      $region36: #{tpu_custom_call.1} parent=5 // pred_fallthru
        _
      %p781 = scmp.le.s32.totalorder 2, %s18
      // Predicated region
      $region61: #{tpu_custom_call.1} parent=5 // pred_check
        %p782 = pneg %p781
      $region62: #{tpu_custom_call.1} parent=5 // pred_check_branch
        %784 = sbr.rel (%p782) target = $region64
      $region63: #{tpu_custom_call.1} parent=5 // pred_region
        %s785 = ssub.s32 %s18, 2
      $region64: #{tpu_custom_call.1} parent=5 // pred_fallthru
        _
    $region6: #{tpu_custom_call.1} parent=1 // loop_footer
      %s22 = sadd.s32 1, %s18
    $region7: #{tpu_custom_call.1} parent=1 // loop_footer_branch
      %17 = sbr.rel target = $region3
    $region8: #{tpu_custom_call.1} parent=1 // loop_exit
      _
    %786 = vsyncpa [#allocation4], 1
    %s787 = scalar_lea.sflag [#allocation4], 1
    %788 = vsyncpa %s787, 1
    %789 = vsyncpa [#allocation7], 1
    %s790 = scalar_lea.sflag [#allocation7], 1
    %791 = vsyncpa %s790, 1
    %792 = vsyncpa [#allocation5], 1
    %s793 = scalar_lea.sflag [#allocation5], 1
    %794 = vsyncpa %s793, 1

</llo_original>
